<compile_context>
chip_gen: v6e
topology: v6e:2x2x1
jax: 0.10.0
libtpu: 0.0.40
codegen_flags: <defaults>
</compile_context>

<pallas_src>
import jax
import jax.numpy as jnp
from jax.experimental import pallas as pl
from jax.experimental.pallas import tpu as pltpu


# ----------------------------- Pallas kernel --------------------------------
def _linear_kernel(x_ref, w_ref, b_ref, o_ref, acc_ref):
    # x_ref: (tm, tk), w_ref: (tk, tn), b_ref: (1, tn), o_ref: (tm, tn)
    k = pl.program_id(2)

    @pl.when(k == 0)
    def _():
        # Fold the bias into the accumulator init instead of a separate add.
        acc_ref[...] = jnp.broadcast_to(
            b_ref[...].astype(jnp.float32), acc_ref.shape)

    acc_ref[...] += jnp.dot(
        x_ref[...], w_ref[...], preferred_element_type=jnp.float32)

    @pl.when(k == pl.num_programs(2) - 1)
    def _():
        o_ref[...] = acc_ref[...].astype(o_ref.dtype)


def _round_up(x, m):
    return ((x + m - 1) // m) * m


def pallas_linear(x2d, w_kn, b_n, *, tm=256, tn=256, tk=512, out_dtype=None):
    """y = x2d @ w_kn + b_n with a tiled, pipelined Pallas matmul.

    x2d: (M, K), w_kn: (K, N), b_n: (N,)  ->  (M, N) in `out_dtype`.
    """
    if out_dtype is None:
        out_dtype = x2d.dtype
    M, K = x2d.shape
    Kw, N = w_kn.shape
    assert K == Kw and b_n.shape == (N,)

    # Clamp tiles for tiny problems; keep the lane dims multiples of 128 and
    # the sublane dim a multiple of 8 so blocks are legal and output stores
    # stay lane-dense (unmasked vst).
    tm = min(tm, _round_up(M, 8))
    tn = min(tn, _round_up(N, 128))
    tk = min(tk, _round_up(K, 128))
    Mp, Kp, Np = _round_up(M, tm), _round_up(K, tk), _round_up(N, tn)

    if (Mp, Kp) != (M, K):
        x2d = jnp.pad(x2d, ((0, Mp - M), (0, Kp - K)))
    if (Kp, Np) != (K, N):
        w_kn = jnp.pad(w_kn, ((0, Kp - K), (0, Np - N)))
    if Np != N:
        b_n = jnp.pad(b_n, ((0, Np - N),))
    b_1n = b_n.reshape(1, Np).astype(jnp.float32)

    grid = (Mp // tm, Np // tn, Kp // tk)

    cost = pl.CostEstimate(
        flops=2 * Mp * Np * Kp,
        transcendentals=0,
        bytes_accessed=int(
            x2d.size * x2d.dtype.itemsize
            + w_kn.size * w_kn.dtype.itemsize
            + b_1n.size * b_1n.dtype.itemsize
            + Mp * Np * jnp.dtype(out_dtype).itemsize),
    )

    out = pl.pallas_call(
        _linear_kernel,
        out_shape=jax.ShapeDtypeStruct((Mp, Np), out_dtype),
        grid_spec=pltpu.PrefetchScalarGridSpec(
            num_scalar_prefetch=0,
            grid=grid,
            in_specs=[
                pl.BlockSpec((tm, tk), lambda i, j, k: (i, k)),
                pl.BlockSpec((tk, tn), lambda i, j, k: (k, j)),
                # Bias block index is constant in k: fetched once per (i, j).
                pl.BlockSpec((1, tn), lambda i, j, k: (0, j)),
            ],
            out_specs=pl.BlockSpec((tm, tn), lambda i, j, k: (i, j)),
            scratch_shapes=[pltpu.VMEM((tm, tn), jnp.float32)],
        ),
        compiler_params=pltpu.CompilerParams(
            # M/N "parallel" -> sharded across v7x's 2 TensorCores;
            # K is the reduction axis (accumulator revisits the output block).
            dimension_semantics=("parallel", "parallel", "arbitrary"),
            vmem_limit_bytes=48 * 1024 * 1024,
        ),
        cost_estimate=cost,
    )(x2d, w_kn, b_1n)

    return out[:M, :N]


# --------------------------- shape bookkeeping -------------------------------
INCORRECT_INPUT_TYPE = ('currently supported input types are jax.Array, List,'
                        'Tuple or combination of them found: ')


def _get_shape(*inputs):
    """JAX port of pytorch_Gpipe.utils._get_shape: shapes minus the batch dim."""
    shapes = []
    for x in inputs:
        if isinstance(x, jax.Array):
            shapes.append(tuple(x.shape[1:]))
        elif isinstance(x, (list, tuple)):
            shapes.append(type(x)(_get_shape(*x)))
        else:
            raise ValueError(INCORRECT_INPUT_TYPE + f'{type(x)} ')
    return tuple(shapes)


class PallasLinear:
    """The wrapped sub_module: Linear(hidden -> hidden) with a Pallas matmul."""

    def __init__(self, hidden, key, compute_dtype=jnp.float32):
        kw, kb = jax.random.split(key)
        # torch.nn.Linear stores weight as (out, in); keep that convention for
        # the master copy and pre-transpose ONCE for the kernel (no per-call .T).
        self.weight = jax.random.normal(kw, (hidden, hidden), jnp.float32) * 0.02
        self.bias = jax.random.normal(kb, (hidden,), jnp.float32) * 0.02
        self.compute_dtype = compute_dtype
        self._w_kn = self.weight.T.astype(compute_dtype)   # (in, out)
        self._b_n = self.bias.astype(jnp.float32)          # bias stays f32
        self._forward = jax.jit(self._forward_impl)

    def _forward_impl(self, x):
        *lead, h = x.shape
        x2d = x.reshape(-1, h).astype(self.compute_dtype)
        y2d = pallas_linear(x2d, self._w_kn, self._b_n, out_dtype=x.dtype)
        return y2d.reshape(*lead, self._w_kn.shape[1])

    def __call__(self, x):
        return self._forward(x)


class ShapeWrapper:
    """Records the wrapped layer's input/output shapes without the batch dim
    on every forward call (mirrors pytorch_Gpipe.utils.ShapeWrapper).

    Shape recording is deliberately kept OUTSIDE any jit so real shapes (not
    tracer shapes) are recorded each call.
    """

    def __init__(self, sub_module):
        self.output_shape = []
        self.layer = sub_module
        self.input_shape = []

    def __call__(self, *inputs):
        self.input_shape = _get_shape(inputs)
        outs = self.layer(*inputs)
        self.output_shape = _get_shape(outs)
        return outs

    # container-protocol passthroughs, as in the original wrapper
    def __iter__(self):
        return iter(self.layer)

    def __getitem__(self, key):
        return self.layer[key]

    def __len__(self):
        return len(self.layer)

    def __contains__(self, key):
        return key in self.layer


# --------------------------------- main --------------------------------------
if __name__ == "__main__":
    key = jax.random.PRNGKey(0)
    k_in, k_mod = jax.random.split(key)

    batch, seq, hidden = 2, 8, 32
    x = jax.random.normal(k_in, (batch, seq, hidden), jnp.float32)

    # f32-operand path.
    module = ShapeWrapper(PallasLinear(hidden, k_mod))
    out = jax.block_until_ready(module(x))

    ref = (x.reshape(-1, hidden) @ module.layer.weight.T + module.layer.bias
           ).reshape(batch, seq, hidden)
    # Tolerance accounts for possible MXU default-precision (bf16-pass)
    # differences between the Pallas matmul and the XLA reference dot.
    assert jnp.allclose(out, ref, atol=2e-3, rtol=2e-2), "f32 path mismatch"

    # ShapeWrapper semantics, matching the PyTorch original exactly:
    #   forward calls _get_shape(inputs) on the *tuple* of inputs -> one extra
    #   level of nesting; _get_shape(outs) on the single output tensor.
    assert module.input_shape == (((seq, hidden),),), module.input_shape
    assert module.output_shape == ((seq, hidden),), module.output_shape

    # bf16-operand / f32-accumulate path (performance option from the review);
    # same PRNG key -> identical weights, looser tolerance for bf16 operands.
    module_bf16 = ShapeWrapper(
        PallasLinear(hidden, k_mod, compute_dtype=jnp.bfloat16))
    out_bf16 = jax.block_until_ready(module_bf16(x))
    assert jnp.allclose(out_bf16, ref, atol=1e-2, rtol=5e-2), "bf16 path mismatch"
    assert module_bf16.output_shape == ((seq, hidden),)

    print("KERNEL_OK")
</pallas_src>

<mosaic_0001>
module attributes {stable_mosaic.version = 11 : i64} {
  func.func @_linear_kernel(%arg0: i32, %arg1: i32, %arg2: i32, %arg3: memref<16x128xf32, #tpu.memory_space<vmem>>, %arg4: memref<128x128xf32, #tpu.memory_space<vmem>>, %arg5: memref<1x128xf32, #tpu.memory_space<vmem>>, %arg6: memref<16x128xf32, #tpu.memory_space<vmem>>, %arg7: memref<16x128xf32, #tpu.memory_space<vmem>>) attributes {dimension_semantics = [#tpu.dimension_semantics<parallel>, #tpu.dimension_semantics<parallel>, #tpu.dimension_semantics<arbitrary>], iteration_bounds = array<i64: 1, 1, 1>, scalar_prefetch = 0 : i64, scratch_operands = 1 : i64, tpu.core_type = #tpu.core_type<tc>, window_params = [{transform_indices = @transform_0, window_bounds = array<i64: 16, 128>}, {transform_indices = @transform_1, window_bounds = array<i64: 128, 128>}, {transform_indices = @transform_2, window_bounds = array<i64: 1, 128>}, {transform_indices = @transform_3, window_bounds = array<i64: 16, 128>}]} {
    %c0_i32 = arith.constant 0 : i32
    %0 = arith.cmpi eq, %arg2, %c0_i32 : i32
    %1 = arith.extui %0 : i1 to i32
    %c0_i32_0 = arith.constant 0 : i32
    %2 = arith.cmpi ne, %1, %c0_i32_0 : i32
    scf.if %2 {
      %c0_10 = arith.constant 0 : index
      %c0_11 = arith.constant 0 : index
      %12 = vector.load %arg5[%c0_10, %c0_11] : memref<1x128xf32, #tpu.memory_space<vmem>>, vector<1x128xf32>
      %13 = vector.shape_cast %12 : vector<1x128xf32> to vector<1x128xf32>
      %14 = vector.broadcast %13 : vector<1x128xf32> to vector<16x128xf32>
      %c0_12 = arith.constant 0 : index
      %c0_13 = arith.constant 0 : index
      %15 = vector.load %arg7[%c0_12, %c0_13] : memref<16x128xf32, #tpu.memory_space<vmem>>, vector<16x128xf32>
      tpu.vector_store %arg7[%c0_12, %c0_13], %14 {strides = array<i32>} : memref<16x128xf32, #tpu.memory_space<vmem>>, vector<16x128xf32>,
    } else {
    }
    %c0 = arith.constant 0 : index
    %c0_1 = arith.constant 0 : index
    %3 = vector.load %arg7[%c0, %c0_1] : memref<16x128xf32, #tpu.memory_space<vmem>>, vector<16x128xf32>
    %c0_2 = arith.constant 0 : index
    %c0_3 = arith.constant 0 : index
    %4 = vector.load %arg3[%c0_2, %c0_3] : memref<16x128xf32, #tpu.memory_space<vmem>>, vector<16x128xf32>
    %c0_4 = arith.constant 0 : index
    %c0_5 = arith.constant 0 : index
    %5 = vector.load %arg4[%c0_4, %c0_5] : memref<128x128xf32, #tpu.memory_space<vmem>>, vector<128x128xf32>
    %cst = arith.constant dense<0.000000e+00> : vector<16x128xf32>
    %6 = tpu.matmul %4, %5, %cst {dimension_numbers = #tpu.dot_dimension_numbers<[1], [0], [0], [1], [0, 0, 1, 1], [], []>} : vector<16x128xf32>, vector<128x128xf32>, vector<16x128xf32> -> vector<16x128xf32>
    %7 = arith.addf %3, %6 : vector<16x128xf32>
    %c0_6 = arith.constant 0 : index
    %c0_7 = arith.constant 0 : index
    %8 = vector.load %arg7[%c0_6, %c0_7] : memref<16x128xf32, #tpu.memory_space<vmem>>, vector<16x128xf32>
    tpu.vector_store %arg7[%c0_6, %c0_7], %7 {strides = array<i32>} : memref<16x128xf32, #tpu.memory_space<vmem>>, vector<16x128xf32>,
    %c0_i32_8 = arith.constant 0 : i32
    %9 = arith.cmpi eq, %arg2, %c0_i32_8 : i32
    %10 = arith.extui %9 : i1 to i32
    %c0_i32_9 = arith.constant 0 : i32
    %11 = arith.cmpi ne, %10, %c0_i32_9 : i32
    scf.if %11 {
      %c0_10 = arith.constant 0 : index
      %c0_11 = arith.constant 0 : index
      %12 = vector.load %arg7[%c0_10, %c0_11] : memref<16x128xf32, #tpu.memory_space<vmem>>, vector<16x128xf32>
      %c0_12 = arith.constant 0 : index
      %c0_13 = arith.constant 0 : index
      %13 = vector.load %arg6[%c0_12, %c0_13] : memref<16x128xf32, #tpu.memory_space<vmem>>, vector<16x128xf32>
      tpu.vector_store %arg6[%c0_12, %c0_13], %12 {strides = array<i32>} : memref<16x128xf32, #tpu.memory_space<vmem>>, vector<16x128xf32>,
    } else {
    }
    return
  }
  func.func @transform_0(%arg0: i32, %arg1: i32, %arg2: i32) -> (i32, i32) {
    %c0_i32 = arith.constant 0 : i32
    return %arg0, %arg2 : i32, i32
  }
  func.func @transform_1(%arg0: i32, %arg1: i32, %arg2: i32) -> (i32, i32) {
    %c0_i32 = arith.constant 0 : i32
    return %arg2, %arg1 : i32, i32
  }
  func.func @transform_2(%arg0: i32, %arg1: i32, %arg2: i32) -> (i32, i32) {
    %c0_i32 = arith.constant 0 : i32
    %c0_i32_0 = arith.constant 0 : i32
    return %c0_i32, %arg1 : i32, i32
  }
  func.func @transform_3(%arg0: i32, %arg1: i32, %arg2: i32) -> (i32, i32) {
    %c0_i32 = arith.constant 0 : i32
    return %arg0, %arg1 : i32, i32
  }
}

</mosaic_0001>

<llo_original>
// kernel: _forward_impl.1
$region0: #{_forward_impl.1}
  #allocation0 [shape = 'u32[]', space=smem, size = 0x4, offset = 0x4, fixed_abs, tag = 'smem constant byte address 0x4 - core index']
  #allocation1 [shape = 'u32[144,128]{1,0:T(1,128)}', space=vmem, size = 0x12000, scoped, tag = 'internal scratch']
  #allocation2 [shape = 'f32[16,128]{1,0:T(8,128)}', space=vmem, size = 0x2000, scoped, tag = 'scratch operand']
  %s0 = inlined_call_operand.vmem [shape: f32[16,128], index: 0, kind: input, shape index: {}]
  %s1 = inlined_call_operand.hbm [shape: f32[128,128], index: 1, kind: input, shape index: {}]
  %s2 = inlined_call_operand.vmem [shape: f32[1,128], index: 2, kind: input, shape index: {}]
  %s3 = inlined_call_operand.vmem [shape: f32[16,128], index: 3, kind: output, shape index: {}]
  %s4 = sld [smem:[#allocation0]]
  $region34: #{_forward_impl.1} parent=0
    _
  %s6 = ssub.s32 1, %s4
  %s7 = scalar_select 0, %s6, %s4
  $region1: #{_forward_impl.1} parent=0
    #allocation3 [shape = 'u8[65536]{0}', space=vmem, size = 0x10000, scoped, tag = 'input window, operand 1, single buffered']
    #allocation4 [shape = 's32[1]{0}', space=sflag, size = 0x4, scoped, tag = 'scoped memory for _forward_impl.1']
    %8 = vsyncpa [#allocation4], 0
    // Predicated region
    $region2: #{_forward_impl.1} parent=1 // pred_check
      _
    $region3: #{_forward_impl.1} parent=1 // pred_check_branch
      %10 = sbr.rel (0) target = $region5
    $region4: #{_forward_impl.1} parent=1 // pred_region
      _
    $region5: #{_forward_impl.1} parent=1 // pred_fallthru
      _
    // Predicated region
    $region6: #{_forward_impl.1} parent=1 // pred_check
      _
    $region7: #{_forward_impl.1} parent=1 // pred_check_branch
      %12 = sbr.rel (0) target = $region9
    $region8: #{_forward_impl.1} parent=1 // pred_region
      %s14 = ssub.s32 2048, 2048
      %15 = vsyncadd [#allocation4], %s14
      %s16 = sshll.u32 [#allocation3], 4
      %s17 = int_to_ptr.vmem [resolvable:$true] %s16
      %22 = dma.hbm_to_vmem [thread:$0]  %s1, 2048, %s17, [#allocation4], 128, 128, 8
    $region9: #{_forward_impl.1} parent=1 // pred_fallthru
      _
    // Predicated region
    $region10: #{_forward_impl.1} parent=1 // pred_check
      _
    $region11: #{_forward_impl.1} parent=1 // pred_check_branch
      %24 = sbr.rel (0) target = $region13
    $region12: #{_forward_impl.1} parent=1 // pred_region
      _
    $region13: #{_forward_impl.1} parent=1 // pred_fallthru
      _
    // Predicated region
    $region14: #{_forward_impl.1} parent=1 // pred_check
      _
    $region15: #{_forward_impl.1} parent=1 // pred_check_branch
      %26 = sbr.rel (0) target = $region17
    $region16: #{_forward_impl.1} parent=1 // pred_region
      %27 = dma.done [#allocation4], 2048
    $region17: #{_forward_impl.1} parent=1 // pred_fallthru
      _
    %p28 = scmp.eq.s32.totalorder 0, 0
    // Predicated region
    $region18: #{_forward_impl.1} parent=1 // pred_check
      %p29 = pneg %p28
    $region19: #{_forward_impl.1} parent=1 // pred_check_branch
      %31 = sbr.rel (%p29) target = $region21
    $region20: #{_forward_impl.1} parent=1 // pred_region
      %v32 = vld [vmem:[%s2] sm:$0x1]
      %v34 = vlaneseq
      %v35 = vshrl.u32 %v34, 7
      %v36 = vsub.s32 0, %v35
      %v37 = vrot.slane %v32, %v36
      %39 = vst [vmem:[#allocation2] sm:$0xff] %v37
      %40 = vst [vmem:[#allocation2 + $0x8] sm:$0xff] %v37
    $region21: #{_forward_impl.1} parent=1 // pred_fallthru
      _
    %v41 = vld [vmem:[#allocation2] sm:$0xff]
    %v42 = vld [vmem:[#allocation2 + $0x8] sm:$0xff]
    %v43 = vld [vmem:[%s0] sm:$0xff]
    %v44 = vld [vmem:[%s0 + $0x8] sm:$0xff]
    %v45 = vld [vmem:[#allocation3] sm:$0xff]
    %v46 = vld [vmem:[#allocation3 + $0x8] sm:$0xff]
    %v47 = vld [vmem:[#allocation3 + $0x10] sm:$0xff]
    %v48 = vld [vmem:[#allocation3 + $0x18] sm:$0xff]
    %v49 = vld [vmem:[#allocation3 + $0x20] sm:$0xff]
    %v50 = vld [vmem:[#allocation3 + $0x28] sm:$0xff]
    %v51 = vld [vmem:[#allocation3 + $0x30] sm:$0xff]
    %v52 = vld [vmem:[#allocation3 + $0x38] sm:$0xff]
    %v53 = vld [vmem:[#allocation3 + $0x40] sm:$0xff]
    %v54 = vld [vmem:[#allocation3 + $0x48] sm:$0xff]
    %v55 = vld [vmem:[#allocation3 + $0x50] sm:$0xff]
    %v56 = vld [vmem:[#allocation3 + $0x58] sm:$0xff]
    %v57 = vld [vmem:[#allocation3 + $0x60] sm:$0xff]
    %v58 = vld [vmem:[#allocation3 + $0x68] sm:$0xff]
    %v59 = vld [vmem:[#allocation3 + $0x70] sm:$0xff]
    %v60 = vld [vmem:[#allocation3 + $0x78] sm:$0xff]
    %61 = vmatprep.subr.mxu0 0.0
    %62 = vmatpush1.msra.mxu0 %v60
    %63 = vmatprep.subr.mxu0 0.0
    %64 = vmatpush1.msra.mxu0 %v59
    %65 = vmatprep.subr.mxu0 0.0
    %66 = vmatpush1.msra.mxu0 %v58
    %67 = vmatprep.subr.mxu0 0.0
    %68 = vmatpush1.msra.mxu0 %v57
    %69 = vmatprep.subr.mxu0 0.0
    %70 = vmatpush1.msra.mxu0 %v56
    %71 = vmatprep.subr.mxu0 0.0
    %72 = vmatpush1.msra.mxu0 %v55
    %73 = vmatprep.subr.mxu0 0.0
    %74 = vmatpush1.msra.mxu0 %v54
    %75 = vmatprep.subr.mxu0 0.0
    %76 = vmatpush1.msra.mxu0 %v53
    %77 = vmatprep.subr.mxu0 0.0
    %78 = vmatpush1.msra.mxu0 %v52
    %79 = vmatprep.subr.mxu0 0.0
    %80 = vmatpush1.msra.mxu0 %v51
    %81 = vmatprep.subr.mxu0 0.0
    %82 = vmatpush1.msra.mxu0 %v50
    %83 = vmatprep.subr.mxu0 0.0
    %84 = vmatpush1.msra.mxu0 %v49
    %85 = vmatprep.subr.mxu0 0.0
    %86 = vmatpush1.msra.mxu0 %v48
    %87 = vmatprep.subr.mxu0 0.0
    %88 = vmatpush1.msra.mxu0 %v47
    %89 = vmatprep.subr.mxu0 0.0
    %90 = vmatpush1.msra.mxu0 %v46
    %91 = vmatprep.subr.mxu0 0.0
    %92 = vmatpush1.msra.mxu0 %v45
    %93 = vmatprep.subr.mxu0 0.0
    %94 = vmatpush2.msra.mxu0 0.0
    %95 = vmatprep.subr.mxu0 0.0
    %96 = vmatpush2.msra.mxu0 0.0
    %97 = vmatprep.subr.mxu0 0.0
    %98 = vmatpush2.msra.mxu0 0.0
    %99 = vmatprep.subr.mxu0 0.0
    %100 = vmatpush2.msra.mxu0 0.0
    %101 = vmatprep.subr.mxu0 0.0
    %102 = vmatpush2.msra.mxu0 0.0
    %103 = vmatprep.subr.mxu0 0.0
    %104 = vmatpush2.msra.mxu0 0.0
    %105 = vmatprep.subr.mxu0 0.0
    %106 = vmatpush2.msra.mxu0 0.0
    %107 = vmatprep.subr.mxu0 0.0
    %108 = vmatpush2.msra.mxu0 0.0
    %109 = vmatprep.subr.mxu0 0.0
    %110 = vmatpush2.msra.mxu0 0.0
    %111 = vmatprep.subr.mxu0 0.0
    %112 = vmatpush2.msra.mxu0 0.0
    %113 = vmatprep.subr.mxu0 0.0
    %114 = vmatpush2.msra.mxu0 0.0
    %115 = vmatprep.subr.mxu0 0.0
    %116 = vmatpush2.msra.mxu0 0.0
    %117 = vmatprep.subr.mxu0 0.0
    %118 = vmatpush2.msra.mxu0 0.0
    %119 = vmatprep.subr.mxu0 0.0
    %120 = vmatpush2.msra.mxu0 0.0
    %121 = vmatprep.subr.mxu0 0.0
    %122 = vmatpush2.msra.mxu0 0.0
    %123 = vmatprep.subr.mxu0 0.0
    %124 = vmatpush2.msra.mxu0 0.0
    %125 = vmatprep.mubr.f32.mxu0 0.0
    %126 = vmatmul.mubr.f32.gmra.mxu0 %v43
    %v127 = vpop.f32.mrf.mxu0
    %v128 = vadd.f32 0.0, %v127
    %v129 = vpop.f32.mrf.mxu0
    %130 = vmatprep.mubr.f32.mxu0 0.0
    %131 = vmatmul.mubr.f32.gmra.mxu0 %v44
    %v132 = vpop.f32.mrf.mxu0
    %v133 = vadd.f32 0.0, %v132
    %v134 = vpop.f32.mrf.mxu0
    %135 = vdwg.mxu0
    %v136 = vadd.f32 %v41, %v128
    %v137 = vadd.f32 %v42, %v133
    %138 = vst [vmem:[#allocation2] sm:$0xff] %v136
    %139 = vst [vmem:[#allocation2 + $0x8] sm:$0xff] %v137
    // Predicated region
    $region22: #{_forward_impl.1} parent=1 // pred_check
      %p140 = pneg %p28
    $region23: #{_forward_impl.1} parent=1 // pred_check_branch
      %142 = sbr.rel (%p140) target = $region25
    $region24: #{_forward_impl.1} parent=1 // pred_region
      %v143 = vld [vmem:[#allocation2] sm:$0xff]
      %v144 = vld [vmem:[#allocation2 + $0x8] sm:$0xff]
      %145 = vst [vmem:[%s3] sm:$0xff] %v143
      %146 = vst [vmem:[%s3 + $0x8] sm:$0xff] %v144
    $region25: #{_forward_impl.1} parent=1 // pred_fallthru
      _
    // Predicated region
    $region26: #{_forward_impl.1} parent=1 // pred_check
      _
    $region27: #{_forward_impl.1} parent=1 // pred_check_branch
      %148 = sbr.rel (0) target = $region29
    $region28: #{_forward_impl.1} parent=1 // pred_region
      _
    $region29: #{_forward_impl.1} parent=1 // pred_fallthru
      _
    // Predicated region
    $region30: #{_forward_impl.1} parent=1 // pred_check
      _
    $region31: #{_forward_impl.1} parent=1 // pred_check_branch
      %150 = sbr.rel (0) target = $region33
    $region32: #{_forward_impl.1} parent=1 // pred_region
      _
    $region33: #{_forward_impl.1} parent=1 // pred_fallthru
      _
    %151 = vsyncpa [#allocation4], 1

</llo_original>
